<compile_context>
chip_gen: v7x
topology: tpu7x:2x2x1
jax: 0.10.0
libtpu: 0.0.40
codegen_flags: <defaults>
</compile_context>

<pallas_src>
import functools

import numpy as np
import jax
import jax.numpy as jnp
from jax import lax
from jax.experimental import pallas as pl
from jax.experimental.pallas import tpu as pltpu


def _round_up(n, m):
    return ((n + m - 1) // m) * m


@functools.lru_cache(maxsize=None)
def _vmem_limit_bytes():
    """Scoped-VMEM limit: ~3/4 of physical VMEM, capped (v5e/v6e -> 96 MiB,
    v7x -> 48 MiB).  Falls back to a conservative 48 MiB if the query fails."""
    try:
        cap = int(pltpu.get_tpu_info().vmem_capacity_bytes)
        return int(max(32 << 20, min((cap * 3) // 4, 100 << 20)))
    except Exception:
        return 48 << 20


# --------------------------------------------------------------------------- #
# 1) Tiled global average pool (attention2d input for the first block)         #
# --------------------------------------------------------------------------- #
def _global_avg_pool_kernel(x_ref, out_ref, acc_ref, *, inv_hw, hw, needs_mask):
    t = pl.program_id(1)

    @pl.when(t == 0)
    def _init():
        acc_ref[...] = jnp.zeros_like(acc_ref)

    xv = x_ref[...].astype(jnp.float32)                    # (C, tile)
    if needs_mask:
        tile = xv.shape[-1]
        col = lax.broadcasted_iota(jnp.int32, xv.shape, 1) + t * tile
        xv = jnp.where(col < hw, xv, 0.0)                  # mask OOB tail in-kernel
    acc_ref[...] += xv

    @pl.when(t == pl.num_programs(1) - 1)
    def _finalize():
        out_ref[...] = (jnp.sum(acc_ref[...], axis=-1, keepdims=True)
                        * inv_hw).astype(out_ref.dtype)


def global_avg_pool(x, *, target_tile=2048, budget_bytes=12 << 20):
    """x: (B, C, H, W) NCHW -> per-channel means (B, C) float32."""
    B, C, H, W = x.shape
    hw = H * W
    tile = min(target_tile, _round_up(hw, 128))
    while C * tile * 4 * 3 > budget_bytes and tile > 128:
        tile //= 2
    tile = max(128, (tile // 128) * 128)
    n_t = pl.cdiv(hw, tile)
    needs_mask = (hw % tile) != 0

    kernel = functools.partial(_global_avg_pool_kernel, inv_hw=1.0 / float(hw),
                               hw=hw, needs_mask=needs_mask)
    pooled = pl.pallas_call(
        kernel,
        out_shape=jax.ShapeDtypeStruct((B, C, 1), jnp.float32),
        grid_spec=pltpu.PrefetchScalarGridSpec(
            num_scalar_prefetch=0,
            grid=(B, n_t),
            in_specs=[pl.BlockSpec((None, C, tile), lambda b, t: (b, 0, t))],
            out_specs=pl.BlockSpec((None, C, 1), lambda b, t: (b, 0, 0)),
            scratch_shapes=[pltpu.VMEM((C, tile), jnp.float32)]),
        compiler_params=pltpu.CompilerParams(
            dimension_semantics=("parallel", "arbitrary"),
            vmem_limit_bytes=_vmem_limit_bytes()),
    )(x.reshape(B, C, hw))
    return pooled[..., 0]                                   # (B, C)


def attention_fc(pooled, w1, w2, temperature):
    """attention2d fc1 -> relu -> fc2 -> softmax( /T ).  pooled: (B, C) means."""
    high = jax.lax.Precision.HIGHEST
    h = jnp.maximum(jnp.einsum("bc,hc->bh", pooled, w1, precision=high), 0.0)
    logits = jnp.einsum("bh,kh->bk", h, w2, precision=high) / temperature
    return jax.nn.softmax(logits, axis=-1)


# --------------------------------------------------------------------------- #
# 2) Fused dynamic depthwise 3x3 + 1x1(+bias) + BN(eval) + ReLU [+ sSE / pool] #
# --------------------------------------------------------------------------- #
def _dyn_block_kernel(x_ref, halo_ref, taps_ref, cmask_ref, w_ref, shift_ref,
                      *rest, W, apply_sse):
    if apply_sse:
        sw1_ref, sb1_ref, sw2_ref, sb2_ref, out_ref = rest
    else:
        out_ref, pool_ref = rest

    x = x_ref[...].astype(jnp.float32)                      # (C_in, TH*W)
    halo = halo_ref[...].astype(jnp.float32)                # (C_in, 2*W)
    taps = taps_ref[...].astype(jnp.float32)                # (C_in, 9)
    thw = x.shape[-1]

    # Halo-extended flat row-major map: [zero col | top row | tile | bottom row | zero col]
    zcol = jnp.zeros((x.shape[0], 1), jnp.float32)
    x_ext = jnp.concatenate([zcol, halo[:, :W], x, halo[:, W:], zcol], axis=-1)

    # Depthwise 3x3, padding=1: 9 shifted windows grouped per column-shift dj so
    # only 2 column masks (dj=0 / dj=2) are needed; row boundaries are handled by
    # the (zeroed-at-image-edge) halo rows.
    acc = None
    for dj in range(3):
        s = None
        for di in range(3):
            off = di * W + dj
            win = x_ext[:, off:off + thw]                   # input(i+di-1, j+dj-1)
            contrib = taps[:, di * 3 + dj:di * 3 + dj + 1] * win
            s = contrib if s is None else s + contrib
        if dj == 0:
            s = s * cmask_ref[0:1, :]                       # zero output col j==0
        elif dj == 2:
            s = s * cmask_ref[1:2, :]                       # zero output col j==W-1
        acc = s if acc is None else acc + s                 # (C_in, TH*W)

    # 1x1 conv with bias + eval BatchNorm pre-folded into (w, shift), then ReLU.
    y = jnp.dot(w_ref[...], acc, preferred_element_type=jnp.float32) + shift_ref[...]
    y = jnp.maximum(y, 0.0)                                 # (C_out, TH*W)

    if apply_sse:
        # sSE: x * sigmoid(BN(conv1x1(conv1x1(x)))) fused into the epilogue.
        h = jnp.dot(sw1_ref[...], y, preferred_element_type=jnp.float32) + sb1_ref[...]
        z = jnp.dot(sw2_ref[...], h, preferred_element_type=jnp.float32) + sb2_ref[...]
        z = jax.nn.sigmoid(z)                               # (1, TH*W)
        out_ref[...] = (y * z).astype(out_ref.dtype)
    else:
        out_ref[...] = y.astype(out_ref.dtype)
        # Per-tile channel sums -> next block's attention pool (no HBM re-read).
        pool_ref[...] = jnp.sum(y, axis=-1, keepdims=True).astype(pool_ref.dtype)


def _col_masks(TH, W):
    cols = np.arange(TH * W) % W
    left = (cols != 0).astype(np.float32)        # dj=0 reads col j-1 -> invalid at j==0
    right = (cols != W - 1).astype(np.float32)   # dj=2 reads col j+1 -> invalid at j==W-1
    return jnp.asarray(np.stack([left, right], axis=0))     # (2, TH*W)


def _build_halo(x, TH):
    """Neighbor rows above/below each row-tile (zero at the image boundary).
    x: (B, C, H, W) -> (B, n_t, C, 2*W).  Only 2 rows/tile of extra HBM traffic."""
    B, C, H, W = x.shape
    n_t = H // TH
    top_idx = np.arange(n_t) * TH - 1
    bot_idx = np.arange(n_t) * TH + TH
    top_valid = jnp.asarray((top_idx >= 0), x.dtype)
    bot_valid = jnp.asarray((bot_idx < H), x.dtype)
    top = x[:, :, np.clip(top_idx, 0, H - 1), :] * top_valid[None, None, :, None]
    bot = x[:, :, np.clip(bot_idx, 0, H - 1), :] * bot_valid[None, None, :, None]
    halo = jnp.concatenate([top, bot], axis=-1)              # (B, C, n_t, 2W)
    return jnp.transpose(halo, (0, 2, 1, 3))                 # (B, n_t, C, 2W)


def _pick_rows(H, W, c_in, c_out, budget_bytes):
    """Largest row-tile TH with TH | H, lane-dense blocks (TH*W % 128 == 0), and an
    estimated per-step working set under budget_bytes."""
    per_row = (6 * c_in + 4 * c_out) * W * 4
    max_rows = max(1, budget_bytes // max(per_row, 1))
    if max_rows >= H:
        return H
    best = 0
    for th in range(1, min(H, max_rows) + 1):
        if H % th == 0 and (th * W) % 128 == 0:
            best = th
    if best:
        return best
    # TODO(synk): no lane-dense divisor fits the budget; fall back to full-height
    # blocks (correct, but may exceed the per-step VMEM target for huge maps).
    return H


def dyn_conv_block_forward(x, taps, pw_w, pw_b, bn_scale, bn_shift, *,
                           sse=None, out_dtype=jnp.float32,
                           tile_rows=None, row_budget_bytes=None):
    """One unetConv2 block: Dynamic_conv2d (depthwise part) + 1x1(+bias) + BN(eval)
    + ReLU.  If `sse` is given the sSE gate is fused into the epilogue and a single
    output is returned; otherwise (out, per-tile channel sums) is returned.

    x: (B, C_in, H, W); taps: (B, C_in, 9); pw_w: (C_out, C_in);
    pw_b / bn_scale / bn_shift: (C_out,)."""
    B, C_in, H, W = x.shape
    C_out = pw_w.shape[0]
    hw = H * W

    if tile_rows is None:
        budget = row_budget_bytes or max(8 << 20, _vmem_limit_bytes() // 4)
        TH = _pick_rows(H, W, C_in, C_out, budget)
    else:
        TH = tile_rows
        assert H % TH == 0 and (TH == H or (TH * W) % 128 == 0), "bad tile_rows"
    n_t = H // TH
    thw = TH * W

    x_flat = x.reshape(B, C_in, hw)
    halo = _build_halo(x, TH)                                # (B, n_t, C_in, 2W)
    cmask = _col_masks(TH, W)                                # (2, thw)
    # Fold conv bias and eval-BN into the 1x1 weights: y = (s*W)x + (s*b + shift)
    w_fold = (bn_scale[:, None] * pw_w).astype(jnp.float32)
    s_fold = (bn_shift + bn_scale * pw_b).reshape(C_out, 1).astype(jnp.float32)

    in_specs = [
        pl.BlockSpec((None, C_in, thw), lambda b, t: (b, 0, t)),
        pl.BlockSpec((None, None, C_in, 2 * W), lambda b, t: (b, t, 0, 0)),
        pl.BlockSpec((None, C_in, 9), lambda b, t: (b, 0, 0)),
        pl.BlockSpec((2, thw), lambda b, t: (0, 0)),
        pl.BlockSpec((C_out, C_in), lambda b, t: (0, 0)),
        pl.BlockSpec((C_out, 1), lambda b, t: (0, 0)),
    ]
    inputs = [x_flat, halo, taps.astype(jnp.float32), cmask, w_fold, s_fold]

    if sse is not None:
        Ch = sse["w1"].shape[0]
        in_specs += [
            pl.BlockSpec((Ch, C_out), lambda b, t: (0, 0)),
            pl.BlockSpec((Ch, 1), lambda b, t: (0, 0)),
            pl.BlockSpec((1, Ch), lambda b, t: (0, 0)),
            pl.BlockSpec((1, 1), lambda b, t: (0, 0)),
        ]
        inputs += [sse["w1"].astype(jnp.float32),
                   sse["b1"].reshape(Ch, 1).astype(jnp.float32),
                   sse["w2"].astype(jnp.float32),
                   sse["b2"].reshape(1, 1).astype(jnp.float32)]
        out_shape = jax.ShapeDtypeStruct((B, C_out, hw), out_dtype)
        out_specs = pl.BlockSpec((None, C_out, thw), lambda b, t: (b, 0, t))
    else:
        out_shape = (jax.ShapeDtypeStruct((B, C_out, hw), out_dtype),
                     jax.ShapeDtypeStruct((B, n_t, C_out, 1), jnp.float32))
        out_specs = [pl.BlockSpec((None, C_out, thw), lambda b, t: (b, 0, t)),
                     pl.BlockSpec((None, None, C_out, 1), lambda b, t: (b, t, 0, 0))]

    kernel = functools.partial(_dyn_block_kernel, W=W, apply_sse=sse is not None)
    res = pl.pallas_call(
        kernel,
        out_shape=out_shape,
        grid_spec=pltpu.PrefetchScalarGridSpec(
            num_scalar_prefetch=0,
            grid=(B, n_t),
            in_specs=in_specs,
            out_specs=out_specs),
        compiler_params=pltpu.CompilerParams(
            dimension_semantics=("parallel", "parallel"),
            vmem_limit_bytes=_vmem_limit_bytes()),
    )(*inputs)

    if sse is not None:
        return res.reshape(B, C_out, H, W)
    out, pool_sums = res
    return out.reshape(B, C_out, H, W), pool_sums


# --------------------------------------------------------------------------- #
# Full unetConv2 forward (eval mode)                                           #
# --------------------------------------------------------------------------- #
def unet_conv2_forward(x, params, *, act_dtype=jnp.float32):
    blocks = params["blocks"]
    n = len(blocks)
    high = jax.lax.Precision.HIGHEST
    hw = float(x.shape[2] * x.shape[3])

    out = x
    pooled = global_avg_pool(x)                              # (B, C_in) for block 1
    for i, blk in enumerate(blocks):
        attn = attention_fc(pooled, blk["attn_w1"], blk["attn_w2"], blk["temperature"])
        kdim, c_in = blk["dw_weight"].shape[0], out.shape[1]
        taps = jnp.einsum("bk,kcf->bcf", attn,
                          blk["dw_weight"].reshape(kdim, c_in, 9), precision=high)
        if i == n - 1:
            out = dyn_conv_block_forward(out, taps, blk["pw_weight"], blk["pw_bias"],
                                         blk["bn_scale"], blk["bn_shift"],
                                         sse=params["sse"], out_dtype=jnp.float32)
        else:
            out, pool_sums = dyn_conv_block_forward(out, taps, blk["pw_weight"],
                                                    blk["pw_bias"], blk["bn_scale"],
                                                    blk["bn_shift"], sse=None,
                                                    out_dtype=act_dtype)
            pooled = pool_sums.sum(axis=1)[..., 0] / hw      # next block's GAP, no HBM re-read
        # Dropout2d(0.2): identity in eval mode.
    return out


# --------------------------------------------------------------------------- #
# Demo + pure-JAX reference check                                              #
# --------------------------------------------------------------------------- #
if __name__ == "__main__":
    B, in_size, out_size, H, W = 2, 4, 32, 16, 16
    K, ratio, temperature = 4, 0.25, 30.0
    HIGH = jax.lax.Precision.HIGHEST
    eps = 1e-5

    key = jax.random.PRNGKey(0)
    keys = jax.random.split(key, 4)
    x = jax.random.normal(keys[0], (B, in_size, H, W), dtype=jnp.float32)

    def make_block(k, c_in, c_out):
        kk = jax.random.split(k, 9)
        hidden = (int(c_in * ratio) + 1) if c_in != 3 else K
        attn_w1 = jax.random.normal(kk[0], (hidden, c_in)) * (2.0 / c_in) ** 0.5
        attn_w2 = jax.random.normal(kk[1], (K, hidden)) * (2.0 / hidden) ** 0.5
        dw_w = jax.random.normal(kk[2], (K, c_in, 3, 3)) * (2.0 / 9.0) ** 0.5
        pw_w = jax.random.normal(kk[3], (c_out, c_in)) * (2.0 / c_in) ** 0.5
        pw_b = 0.05 * jax.random.normal(kk[4], (c_out,))
        gamma = 1.0 + 0.02 * jax.random.normal(kk[5], (c_out,))
        beta = 0.02 * jax.random.normal(kk[6], (c_out,))
        mean = 0.05 * jax.random.normal(kk[7], (c_out,))
        var = jnp.ones((c_out,))
        scale = gamma / jnp.sqrt(var + eps)
        shift = beta - mean * scale
        return dict(attn_w1=attn_w1, attn_w2=attn_w2, dw_weight=dw_w,
                    pw_weight=pw_w, pw_bias=pw_b, bn_scale=scale, bn_shift=shift,
                    temperature=temperature)

    blk1 = make_block(keys[1], in_size, out_size)
    blk2 = make_block(keys[2], out_size, out_size)

    # sSE params (two 1x1 convs + BatchNorm2d(1) eval + sigmoid); BN folded into conv 2.
    ch = out_size // 16
    kk = jax.random.split(keys[3], 8)
    sse_w1 = jax.random.normal(kk[0], (ch, out_size)) * (1.0 / out_size) ** 0.5
    sse_b1 = 0.05 * jax.random.normal(kk[1], (ch,))
    sse_w2 = jax.random.normal(kk[2], (1, ch)) * (1.0 / ch) ** 0.5
    sse_b2 = 0.05 * jax.random.normal(kk[3], (1,))
    s_gamma = 1.0 + 0.02 * jax.random.normal(kk[4], (1,))
    s_beta = 0.02 * jax.random.normal(kk[5], (1,))
    s_mean = jnp.zeros((1,))
    s_var = jnp.ones((1,))
    s_scale = s_gamma / jnp.sqrt(s_var + eps)
    sse_folded = dict(w1=sse_w1, b1=sse_b1,
                      w2=s_scale[:, None] * sse_w2,
                      b2=s_scale * (sse_b2 - s_mean) + s_beta)
    params = dict(blocks=[blk1, blk2], sse=sse_folded)

    out = unet_conv2_forward(x, params)
    jax.block_until_ready(out)

    # ----------------------- pure-JAX reference (eval) ----------------------- #
    def ref_attention(xx, w1, w2, temp):
        pooled = jnp.mean(xx, axis=(2, 3))
        h = jnp.maximum(jnp.einsum("bc,hc->bh", pooled, w1, precision=HIGH), 0.0)
        logits = jnp.einsum("bh,kh->bk", h, w2, precision=HIGH) / temp
        return jax.nn.softmax(logits, axis=1)

    def ref_block(xx, blk):
        b, c_in, hh, ww = xx.shape
        attn = ref_attention(xx, blk["attn_w1"], blk["attn_w2"], blk["temperature"])
        kdim = blk["dw_weight"].shape[0]
        taps = jnp.einsum("bk,kcf->bcf", attn, blk["dw_weight"].reshape(kdim, c_in, 9),
                          precision=HIGH).reshape(b, c_in, 3, 3)
        xp = jnp.pad(xx, ((0, 0), (0, 0), (1, 1), (1, 1)))
        y = jnp.zeros_like(xx)
        for di in range(3):
            for dj in range(3):
                y = y + taps[:, :, di, dj][:, :, None, None] * xp[:, :, di:di + hh, dj:dj + ww]
        y = jnp.einsum("oc,bcij->boij", blk["pw_weight"], y, precision=HIGH)
        y = y + blk["pw_bias"][None, :, None, None]
        y = y * blk["bn_scale"][None, :, None, None] + blk["bn_shift"][None, :, None, None]
        return jnp.maximum(y, 0.0)

    ref = ref_block(x, blk1)
    ref = ref_block(ref, blk2)
    hm = jnp.einsum("mc,bcij->bmij", sse_w1, ref, precision=HIGH) + sse_b1[None, :, None, None]
    zz = jnp.einsum("om,bmij->boij", sse_w2, hm, precision=HIGH) + sse_b2[None, :, None, None]
    zz = s_scale[None, :, None, None] * (zz - s_mean[None, :, None, None]) \
        + s_beta[None, :, None, None]
    ref_out = ref * jax.nn.sigmoid(zz)

    # Piecewise checks.
    pooled1 = global_avg_pool(x)
    assert jnp.allclose(pooled1, jnp.mean(x, axis=(2, 3)), atol=1e-4, rtol=1e-4), \
        "global average pool mismatch"

    # Exercise the row-tiled path (halo handling, n_row_tiles=2) explicitly.
    attn1 = attention_fc(pooled1, blk1["attn_w1"], blk1["attn_w2"], temperature)
    taps1 = jnp.einsum("bk,kcf->bcf", attn1, blk1["dw_weight"].reshape(K, in_size, 9),
                       precision=HIGH)
    y_tiled, _psum = dyn_conv_block_forward(x, taps1, blk1["pw_weight"], blk1["pw_bias"],
                                            blk1["bn_scale"], blk1["bn_shift"],
                                            sse=None, tile_rows=8)
    assert jnp.allclose(y_tiled, ref_block(x, blk1), atol=2e-2, rtol=2e-2), \
        "row-tiled dyn-conv block mismatch"

    assert jnp.allclose(out, ref_out, atol=2e-2, rtol=2e-2), "unetConv2 forward mismatch"

    # bf16 inter-block activation storage (bandwidth option, esp. v5e): run only.
    out_bf16 = unet_conv2_forward(x, params, act_dtype=jnp.bfloat16)
    jax.block_until_ready(out_bf16)

    print("KERNEL_OK")
</pallas_src>

<mosaic_0001>
module attributes {stable_mosaic.version = 11 : i64} {
  func.func @_global_avg_pool_kernel(%arg0: i32, %arg1: i32, %arg2: memref<1x4x256xf32, #tpu.memory_space<vmem>>, %arg3: memref<1x4x1xf32, #tpu.memory_space<vmem>>, %arg4: memref<4x256xf32, #tpu.memory_space<vmem>>) attributes {dimension_semantics = [#tpu.dimension_semantics<parallel>, #tpu.dimension_semantics<arbitrary>], iteration_bounds = array<i64: 2, 1>, scalar_prefetch = 0 : i64, scratch_operands = 1 : i64, tpu.core_type = #tpu.core_type<tc>, window_params = [{transform_indices = @transform_0, window_bounds = array<i64: 1, 4, 256>}, {transform_indices = @transform_1, window_bounds = array<i64: 1, 4, 1>}]} {
    %c0_i32 = arith.constant 0 : i32
    %0 = arith.cmpi eq, %arg1, %c0_i32 : i32
    %1 = arith.extui %0 : i1 to i32
    %c0_i32_0 = arith.constant 0 : i32
    %2 = arith.cmpi ne, %1, %c0_i32_0 : i32
    scf.if %2 {
      %cst = arith.constant 0.000000e+00 : f32
      %11 = vector.broadcast %cst : f32 to vector<4x256xf32>
      %c0_9 = arith.constant 0 : index
      %c0_10 = arith.constant 0 : index
      %12 = vector.load %arg4[%c0_9, %c0_10] : memref<4x256xf32, #tpu.memory_space<vmem>>, vector<4x256xf32>
      tpu.vector_store %arg4[%c0_9, %c0_10], %11 {strides = array<i32>} : memref<4x256xf32, #tpu.memory_space<vmem>>, vector<4x256xf32>,
    } else {
    }
    %c0 = arith.constant 0 : index
    %c0_1 = arith.constant 0 : index
    %c0_2 = arith.constant 0 : index
    %3 = vector.load %arg2[%c0, %c0_1, %c0_2] : memref<1x4x256xf32, #tpu.memory_space<vmem>>, vector<1x4x256xf32>
    %4 = vector.shape_cast %3 : vector<1x4x256xf32> to vector<4x256xf32>
    %c0_3 = arith.constant 0 : index
    %c0_4 = arith.constant 0 : index
    %5 = vector.load %arg4[%c0_3, %c0_4] : memref<4x256xf32, #tpu.memory_space<vmem>>, vector<4x256xf32>
    %6 = arith.addf %5, %4 : vector<4x256xf32>
    %c0_5 = arith.constant 0 : index
    %c0_6 = arith.constant 0 : index
    %7 = vector.load %arg4[%c0_5, %c0_6] : memref<4x256xf32, #tpu.memory_space<vmem>>, vector<4x256xf32>
    tpu.vector_store %arg4[%c0_5, %c0_6], %6 {strides = array<i32>} : memref<4x256xf32, #tpu.memory_space<vmem>>, vector<4x256xf32>,
    %c0_i32_7 = arith.constant 0 : i32
    %8 = arith.cmpi eq, %arg1, %c0_i32_7 : i32
    %9 = arith.extui %8 : i1 to i32
    %c0_i32_8 = arith.constant 0 : i32
    %10 = arith.cmpi ne, %9, %c0_i32_8 : i32
    scf.if %10 {
      %c0_9 = arith.constant 0 : index
      %c0_10 = arith.constant 0 : index
      %11 = vector.load %arg4[%c0_9, %c0_10] : memref<4x256xf32, #tpu.memory_space<vmem>>, vector<4x256xf32>
      %cst = arith.constant dense<0.000000e+00> : vector<4xf32>
      %12 = vector.multi_reduction <add>, %11, %cst [1] : vector<4x256xf32> to vector<4xf32>
      %13 = vector.shape_cast %12 : vector<4xf32> to vector<4x1xf32>
      %cst_11 = arith.constant 3.906250e-03 : f32
      %14 = vector.broadcast %cst_11 : f32 to vector<4x1xf32>
      %15 = arith.mulf %13, %14 : vector<4x1xf32>
      %c0_12 = arith.constant 0 : index
      %c0_13 = arith.constant 0 : index
      %c0_14 = arith.constant 0 : index
      %16 = vector.load %arg3[%c0_12, %c0_13, %c0_14] : memref<1x4x1xf32, #tpu.memory_space<vmem>>, vector<1x4x1xf32>
      %17 = vector.shape_cast %16 : vector<1x4x1xf32> to vector<4x1xf32>
      %18 = vector.shape_cast %15 : vector<4x1xf32> to vector<1x4x1xf32>
      tpu.vector_store %arg3[%c0_12, %c0_13, %c0_14], %18 {strides = array<i32>} : memref<1x4x1xf32, #tpu.memory_space<vmem>>, vector<1x4x1xf32>,
    } else {
    }
    return
  }
  func.func @transform_0(%arg0: i32, %arg1: i32) -> (i32, i32, i32) {
    %c0_i32 = arith.constant 0 : i32
    %c0_i32_0 = arith.constant 0 : i32
    return %arg0, %c0_i32, %arg1 : i32, i32, i32
  }
  func.func @transform_1(%arg0: i32, %arg1: i32) -> (i32, i32, i32) {
    %c0_i32 = arith.constant 0 : i32
    %c0_i32_0 = arith.constant 0 : i32
    %c0_i32_1 = arith.constant 0 : i32
    return %arg0, %c0_i32, %c0_i32_0 : i32, i32, i32
  }
}

</mosaic_0001>

<llo_original>
// kernel: tpu_custom_call.1
$region0: #{tpu_custom_call.1}
  #allocation0 [shape = 'u32[]', space=smem, size = 0x4, offset = 0x4, fixed_abs, tag = 'smem constant byte address 0x4 - core index']
  #allocation1 [shape = 'u32[144,128]{1,0:T(1,128)}', space=vmem, size = 0x12000, scoped, tag = 'internal scratch']
  #allocation2 [shape = 'f32[4,256]{1,0:T(4,128)}', space=vmem, size = 0x1000, scoped, tag = 'scratch operand']
  %s0 = inlined_call_operand.hbm [shape: f32[2,4,256], index: 0, kind: input, shape index: {}]
  %s1 = inlined_call_operand.vmem [shape: f32[2,4,1], index: 1, kind: output, shape index: {}]
  %s2 = sld [smem:[#allocation0]]
  $region49: #{tpu_custom_call.1} parent=0
    _
  %s4 = ssub.s32 1, %s2
  %s5 = scalar_select 0, %s4, %s2
  $region1: #{tpu_custom_call.1} parent=0
    #allocation3 [shape = 'u8[8192]{0}', space=vmem, size = 0x2000, scoped, tag = 'input window, operand 0']
    #allocation4 [shape = 's32[2]{0}', space=sflag, size = 0x8, scoped, tag = 'scoped memory for tpu_custom_call.1']
    %6 = vsyncpa [#allocation4], 0
    %s7 = scalar_lea.sflag [#allocation4], 1
    %8 = vsyncpa %s7, 0
    loop: start=0, step=1, limit=4
    $region2: #{tpu_custom_call.1} parent=1 // loop_pre_header
      _
    $region3: #{tpu_custom_call.1} parent=1 // loop_header
      %s10 = sphi 0, %s14
      %p11 = scmp.ge.s32.totalorder %s10, 4
      %s17 = sphi 0, %s29
      %s18 = sphi 0, %s25
      %s19 = sphi 0, %s17
      %s20 = sphi 0, %s18
      %s21 = sphi 0, %s19
      %s22 = sphi 0, %s20
      %s34 = sphi 0, %s36
      %s37 = sphi 0, %s34
      %s38 = sphi 0, %s37
      %s54 = sphi 0, %s38
      %s60 = sphi 0, %s62
      %s63 = sphi 0, %s60
      %s64 = sphi 0, %s63
      %s80 = sphi 0, %s64
    $region4: #{tpu_custom_call.1} parent=1 // loop_header_branch
      %13 = sbr.rel (%p11) target = $region8
    $region5: #{tpu_custom_call.1} parent=1 // loop_body
      %s15 = ssub.s32 %s10, 1
      %s16 = ssub.s32 %s10, 2
      %s23 = sadd.s32 1, %s18
      %p24 = scmp.ge.s32.totalorder %s23, 1
      %s25 = scalar_select %p24, 0, %s23
      %s26 = sadd.s32 1, %s17
      %s27 = scalar_select %p24, %s26, %s17
      %p28 = scmp.ge.s32.totalorder %s27, 2
      %s29 = scalar_select %p28, 0, %s27
      %s30 = ssub.s32 %s17, %s29
      %s31 = ssub.s32 %s18, %s25
      %s32 = sor.u32 %s30, %s31
      %p33 = scmp.eq.s32.totalorder %s32, 0
      %s35 = sadd.s32 %s34, 1
      %s36 = scalar_select %p33, %s34, %s35
      %p39 = pneg %p33
      %p40 = scmp.eq.s32.totalorder %s10, 1
      %p41 = por %p39, %p40
      %p42 = scmp.ne.s32.totalorder %s34, %s37
      %p43 = scmp.eq.s32.totalorder %s10, 0
      %p44 = por %p42, %p43
      %p45 = scmp.ne.s32.totalorder %s34, %s37
      %p46 = scmp.eq.s32.totalorder %s15, 1
      %p47 = por %p45, %p46
      %p48 = scmp.ne.s32.totalorder %s37, %s38
      %p49 = scmp.eq.s32.totalorder %s15, 0
      %p50 = por %p48, %p49
      %p51 = scmp.ne.s32.totalorder %s37, %s38
      %p52 = scmp.eq.s32.totalorder %s16, 1
      %p53 = por %p51, %p52
      %p55 = scmp.ne.s32.totalorder %s38, %s54
      %p56 = scmp.eq.s32.totalorder %s16, 0
      %p57 = por %p55, %p56
      %s58 = ssub.s32 %s17, %s29
      %p59 = scmp.eq.s32.totalorder %s58, 0
      %s61 = sadd.s32 %s60, 1
      %s62 = scalar_select %p59, %s60, %s61
      %p65 = pneg %p59
      %p66 = scmp.eq.s32.totalorder %s10, 1
      %p67 = por %p65, %p66
      %p68 = scmp.ne.s32.totalorder %s60, %s63
      %p69 = scmp.eq.s32.totalorder %s10, 0
      %p70 = por %p68, %p69
      %p71 = scmp.ne.s32.totalorder %s60, %s63
      %p72 = scmp.eq.s32.totalorder %s15, 1
      %p73 = por %p71, %p72
      %p74 = scmp.ne.s32.totalorder %s63, %s64
      %p75 = scmp.eq.s32.totalorder %s15, 0
      %p76 = por %p74, %p75
      %p77 = scmp.ne.s32.totalorder %s63, %s64
      %p78 = scmp.eq.s32.totalorder %s16, 1
      %p79 = por %p77, %p78
      %p81 = scmp.ne.s32.totalorder %s64, %s80
      %p82 = scmp.eq.s32.totalorder %s16, 0
      %p83 = por %p81, %p82
      %p84 = scmp.le.s32.totalorder 1, %s10
      %p85 = scmp.lt.s32.totalorder %s10, 3
      %p86 = pnand %p84, %p85
      %p87 = pneg %p86
      // Predicated region
      $region9: #{tpu_custom_call.1} parent=5 // pred_check
        _
      $region10: #{tpu_custom_call.1} parent=5 // pred_check_branch
        %89 = sbr.rel (%p86) target = $region12
      $region11: #{tpu_custom_call.1} parent=5 // pred_region
        %s90 = ssub.s32 %s10, 1
      $region12: #{tpu_custom_call.1} parent=5 // pred_fallthru
        _
      %p91 = scmp.lt.s32.totalorder %s10, 2
      // Predicated region
      $region13: #{tpu_custom_call.1} parent=5 // pred_check
        %p92 = pneg %p91
      $region14: #{tpu_custom_call.1} parent=5 // pred_check_branch
        %94 = sbr.rel (%p92) target = $region16
      $region15: #{tpu_custom_call.1} parent=5 // pred_region
        // Predicated region
        $region17: #{tpu_custom_call.1} parent=15 // pred_check
          %p95 = pneg %p44
        $region18: #{tpu_custom_call.1} parent=15 // pred_check_branch
          %97 = sbr.rel (%p95) target = $region20
        $region19: #{tpu_custom_call.1} parent=15 // pred_region
          %s98 = sand.u32 %s34, 1
          %s99 = scalar_lea.sflag [#allocation4], %s98
          %s100 = sand.u32 %s34, 1
          %s101 = smul.addr %s100, 8
          %s102 = scalar_lea.vmem [#allocation3], %s101
          %s103 = smul.u32 2, %s18
          %s105 = ssub.s32 128, 128
          %106 = vsyncadd %s99, %s105
          %s107 = smul.addr %s17, 2
          %s108 = sadd.s32 %s103, %s107
          %s109 = smul.addr %s108, 64
          %s110 = scalar_lea.hbm %s0, %s109
          %s112 = sshll.u32 %s102, 4
          %s113 = int_to_ptr.vmem [resolvable:$true] %s112
          %115 = dma.hbm_to_vmem [thread:$0]  %s110, 128, %s113, %s99
        $region20: #{tpu_custom_call.1} parent=15 // pred_fallthru
          _
      $region16: #{tpu_custom_call.1} parent=5 // pred_fallthru
        _
      %p116 = scmp.le.s32.totalorder 1, %s10
      %p117 = scmp.lt.s32.totalorder %s10, 3
      %p118 = pnand %p116, %p117
      %p119 = pneg %p118
      // Predicated region
      $region21: #{tpu_custom_call.1} parent=5 // pred_check
        _
      $region22: #{tpu_custom_call.1} parent=5 // pred_check_branch
        %121 = sbr.rel (%p118) target = $region24
      $region23: #{tpu_custom_call.1} parent=5 // pred_region
        %s122 = ssub.s32 %s10, 1
        %s123 = sand.u32 %s37, 1
        %s124 = scalar_lea.sflag [#allocation4], %s123
        %s125 = sand.u32 %s37, 1
        %s126 = smul.addr %s125, 8
        %s127 = scalar_lea.vmem [#allocation3], %s126
        // Predicated region
        $region25: #{tpu_custom_call.1} parent=23 // pred_check
          %p128 = pneg %p50
        $region26: #{tpu_custom_call.1} parent=23 // pred_check_branch
          %130 = sbr.rel (%p128) target = $region28
        $region27: #{tpu_custom_call.1} parent=23 // pred_region
          %131 = dma.done %s124, 128
        $region28: #{tpu_custom_call.1} parent=23 // pred_fallthru
          _
        %s132 = sand.u32 %s37, 1
        %s133 = scalar_lea.sflag [#allocation4], %s132
        %s134 = sand.u32 %s37, 1
        %s135 = smul.addr %s134, 8
        %s136 = scalar_lea.vmem [#allocation3], %s135
        %p137 = pneg %p50
        %p138 = pneg %p47
        %p139 = pneg %p76
        %p140 = pneg %p73
        %p141 = scmp.lt.s32.totalorder %s19, 1
        %s142 = scalar_select %p141, %s19, 1
        %s143 = smul.addr %s142, 4
        %s144 = scalar_lea.vmem %s1, %s143
        %s145 = smul.u32 2, %s20
        %p146 = scmp.lt.s32.totalorder %s19, 1
        %s147 = scalar_select %p146, %s19, 1
        %s148 = smul.addr %s147, 4
        %s149 = scalar_lea.vmem %s1, %s148
        %p150 = scmp.eq.s32.totalorder %s20, 0
        // Predicated region
        $region29: #{tpu_custom_call.1} parent=23 // pred_check
          %p151 = pneg %p150
        $region30: #{tpu_custom_call.1} parent=23 // pred_check_branch
          %153 = sbr.rel (%p151) target = $region32
        $region31: #{tpu_custom_call.1} parent=23 // pred_region
          %154 = vst [vmem:[#allocation2] sm:$0xff] 0.0
        $region32: #{tpu_custom_call.1} parent=23 // pred_fallthru
          _
        %v155 = vld [vmem:[%s127] sm:$0xff]
        %v156 = vld [vmem:[#allocation2] sm:$0xff]
        %v157 = vadd.f32 %v156, %v155
        %158 = vst [vmem:[#allocation2] sm:$0xff] %v157
        // Predicated region
        $region33: #{tpu_custom_call.1} parent=23 // pred_check
          %p159 = pneg %p150
        $region34: #{tpu_custom_call.1} parent=23 // pred_check_branch
          %161 = sbr.rel (%p159) target = $region36
        $region35: #{tpu_custom_call.1} parent=23 // pred_region
          %v162 = vld [vmem:[#allocation2] sm:$0xff]
          %v164 = vcombine.high %v162, %v162
          %vm166 = vcmask 1043456
          %v167 = vsel %vm166, %v162, 0.0
          %v168 = vsel %vm166, %v164, 0.0
          %v169 = vadd.f32 %v167, %v168
          %170 = vadd.xlane.f32.xlu0 %v169
          %v171 = vpop.xlane.xlu0 %170
          %v172 = vmul.f32 %v171, 0.00390625
          %vm173 = vcmask 3072
          %174 = vst.msk [vmem:[%s149] sm:$0xf] %vm173, %v172
        $region36: #{tpu_custom_call.1} parent=23 // pred_fallthru
          _
        %p175 = scmp.lt.s32.totalorder %s19, 1
        %s176 = scalar_select %p175, %s19, 1
        %s177 = smul.addr %s176, 4
        %s178 = scalar_lea.vmem %s1, %s177
        // Predicated region
        $region37: #{tpu_custom_call.1} parent=23 // pred_check
          %p179 = pneg %p73
        $region38: #{tpu_custom_call.1} parent=23 // pred_check_branch
          %181 = sbr.rel (%p179) target = $region40
        $region39: #{tpu_custom_call.1} parent=23 // pred_region
          _
        $region40: #{tpu_custom_call.1} parent=23 // pred_fallthru
          _
      $region24: #{tpu_custom_call.1} parent=5 // pred_fallthru
        _
      %p182 = scmp.le.s32.totalorder 2, %s10
      // Predicated region
      $region41: #{tpu_custom_call.1} parent=5 // pred_check
        %p183 = pneg %p182
      $region42: #{tpu_custom_call.1} parent=5 // pred_check_branch
        %185 = sbr.rel (%p183) target = $region44
      $region43: #{tpu_custom_call.1} parent=5 // pred_region
        %s186 = ssub.s32 %s10, 2
        // Predicated region
        $region45: #{tpu_custom_call.1} parent=43 // pred_check
          %p187 = pneg %p79
        $region46: #{tpu_custom_call.1} parent=43 // pred_check_branch
          %189 = sbr.rel (%p187) target = $region48
        $region47: #{tpu_custom_call.1} parent=43 // pred_region
          %p190 = scmp.lt.s32.totalorder %s21, 1
          %s191 = scalar_select %p190, %s21, 1
          %s192 = smul.addr %s191, 4
          %s193 = scalar_lea.vmem %s1, %s192
        $region48: #{tpu_custom_call.1} parent=43 // pred_fallthru
          _
      $region44: #{tpu_custom_call.1} parent=5 // pred_fallthru
        _
    $region6: #{tpu_custom_call.1} parent=1 // loop_footer
      %s14 = sadd.s32 1, %s10
    $region7: #{tpu_custom_call.1} parent=1 // loop_footer_branch
      %9 = sbr.rel target = $region3
    $region8: #{tpu_custom_call.1} parent=1 // loop_exit
      _
    %194 = vsyncpa [#allocation4], 1
    %s195 = scalar_lea.sflag [#allocation4], 1
    %196 = vsyncpa %s195, 1

</llo_original>
